<compile_context>
chip_gen: v7x
topology: tpu7x:2x2x1
jax: 0.10.0
libtpu: 0.0.40
codegen_flags: <defaults>
</compile_context>

<pallas_src>
import functools

import jax
import jax.numpy as jnp
import jax.scipy.linalg as jsl
from jax import lax
from jax.experimental import pallas as pl
from jax.experimental.pallas import tpu as pltpu


def _congruence_kernel(x_ref, kt_ref, o_ref, *, precision):
    # x_ref:  (TB, n*n)   flattened SPD matrices (row-major per matrix)
    # kt_ref: (n*n, n*n)  resident operator K^T, K = gamma * kron(W, W)
    # o_ref:  (TB, n*n)   flattened outputs
    o_ref[...] = lax.dot_general(
        x_ref[...], kt_ref[...],
        dimension_numbers=(((1,), (0,)), ((), ())),
        precision=precision,
        preferred_element_type=jnp.float32,
    ).astype(o_ref.dtype)


def _build_operator(running_mean, running_var, s, n):
    """Returns (K^T, W, gamma) with W = chol(running_mean)^{-1},
    gamma = s / sqrt(running_var), K = gamma * kron(W, W), so that
    vec_rowmajor(gamma * W X W^T) = K @ vec_rowmajor(X)."""
    L = jnp.linalg.cholesky(running_mean.astype(jnp.float32))
    W = jsl.solve_triangular(L, jnp.eye(n, dtype=jnp.float32), lower=True)
    gamma = (s / jnp.sqrt(running_var)).astype(jnp.float32)
    K = gamma * jnp.kron(W, W)  # (n^2, n^2)
    return jnp.transpose(K).astype(jnp.float32), W, gamma


def _pick_matmul_precision():
    """Per-generation matmul precision: free accuracy wherever the effective
    MXU rate stays above the HBM roofline.
      v6e: HIGHEST (~153 TF/s eff.)  > ~90 TF/s HBM roof     -> free
      v7x: HIGH    (~330 TF/s eff.)  > ~205 TF/s/TC HBM roof -> free
      v5e / unknown: DEFAULT (bf16 MXU); HIGH/HIGHEST would make the 197 TF/s
      MXU the bottleneck vs the ~53 TF/s memory roof."""
    try:
        kind = jax.devices()[0].device_kind.lower()
    except Exception:
        kind = ""
    if "v7" in kind:
        return lax.Precision.HIGH
    if "v6" in kind:
        return lax.Precision.HIGHEST
    return lax.Precision.DEFAULT


def _round_up(x, m):
    return ((x + m - 1) // m) * m


def cholesky_batchnorm_spd_forward(X, running_mean, running_var, s,
                                   *, block_rows=2048, out_dtype=None):
    """Inference forward of CholeskyBatchNormSPD.

    X: (N, h, n, n) SPD matrices; running_mean: (n, n) SPD;
    running_var, s: scalars.  Returns (N, h, n, n) in `out_dtype`
    (defaults to X.dtype)."""
    N, h, n, n2 = X.shape
    assert n == n2 and running_mean.shape == (n, n)
    B = N * h
    nn = n * n
    out_dtype = X.dtype if out_dtype is None else jnp.dtype(out_dtype)

    Kt, _, _ = _build_operator(running_mean, running_var, s, n)
    Xf = X.reshape(B, nn)  # free reshape (contiguous trailing dims)

    # Tile-row selection:
    #  * cap at block_rows=2048 (2 MiB f32 blocks; ~8.5 MiB double-buffered
    #    incl. Kt -> fits the 16 MiB v5e scoped-VMEM default, v6e, v7x);
    #  * for moderately large B target >= 4 grid steps so ("parallel",) can
    #    shard across v7x's two TensorCores instead of leaving one idle;
    #  * multiples of 8 rows (sublane); pad B to a multiple of TB so every
    #    block (incl. the last) is full -> no masked partial stores.
    if B >= 512:
        tb_target = _round_up(pl.cdiv(B, 4), 8)
    else:
        tb_target = _round_up(B, 8)
    TB = max(8, min(block_rows, tb_target))
    Bp = _round_up(B, TB)
    if Bp != B:
        Xf = jnp.pad(Xf, ((0, Bp - B), (0, 0)))
    grid_b = Bp // TB

    kernel = functools.partial(
        _congruence_kernel, precision=_pick_matmul_precision())

    out = pl.pallas_call(
        kernel,
        out_shape=jax.ShapeDtypeStruct((Bp, nn), out_dtype),
        grid_spec=pltpu.PrefetchScalarGridSpec(
            num_scalar_prefetch=0,
            grid=(grid_b,),
            in_specs=[
                pl.BlockSpec((TB, nn), lambda b: (b, 0)),
                # Operator is grid-invariant: single-buffer it (saves 256 KiB
                # of VMEM; there is nothing to prefetch for it).
                pl.BlockSpec((nn, nn), lambda b: (0, 0),
                             pipeline_mode=pl.Buffered(buffer_count=1)),
            ],
            out_specs=pl.BlockSpec((TB, nn), lambda b: (b, 0)),
        ),
        compiler_params=pltpu.CompilerParams(
            dimension_semantics=("parallel",),
        ),
        cost_estimate=pl.CostEstimate(
            flops=2 * Bp * nn * nn,
            transcendentals=0,
            bytes_accessed=(Xf.dtype.itemsize * Bp * nn      # read X
                            + out_dtype.itemsize * Bp * nn   # write Y
                            + 4 * nn * nn),                  # read K^T once
        ),
    )(Xf, Kt)

    if Bp != B:
        out = out[:B]
    # No permute round-trip needed: it is an identity on values.
    return out.reshape(N, h, n, n)


if __name__ == "__main__":
    # Small shapes consistent with forward(): X is (N, h, n, n).
    N, h, n = 2, 4, 16
    key = jax.random.PRNGKey(0)
    k_mean, k_x = jax.random.split(key)

    # Module state (eval mode): SPD running mean, scalar running var / scale s.
    A = jax.random.normal(k_mean, (n, n), dtype=jnp.float32)
    running_mean = A @ A.T + n * jnp.eye(n, dtype=jnp.float32)  # well-conditioned SPD
    running_var = jnp.float32(1.7)
    s = jnp.float32(0.8)

    # SPD inputs: X[b, k] = M M^T + eps * I.
    M = jax.random.normal(k_x, (N, h, n, n), dtype=jnp.float32)
    X = jnp.einsum("bhij,bhkj->bhik", M, M) + 1e-2 * jnp.eye(n, dtype=jnp.float32)

    Y = jax.block_until_ready(
        cholesky_batchnorm_spd_forward(X, running_mean, running_var, s))
    assert Y.shape == (N, h, n, n)

    # Reference: same assumed semantics via a full-precision einsum path.
    _, W, gamma = _build_operator(running_mean, running_var, s, n)
    Y_ref = gamma * jnp.einsum(
        "ij,bhjk,lk->bhil", W, X, W, precision=jax.lax.Precision.HIGHEST)
    assert jnp.allclose(Y, Y_ref, atol=1e-3, rtol=1e-3), "mismatch vs reference"

    print("KERNEL_OK")
</pallas_src>

<mosaic_0001>
module attributes {stable_mosaic.version = 11 : i64} {
  func.func @_congruence_kernel(%arg0: i32, %arg1: memref<8x256xf32, #tpu.memory_space<vmem>>, %arg2: memref<256x256xf32, #tpu.memory_space<vmem>>, %arg3: memref<8x256xf32, #tpu.memory_space<vmem>>) attributes {dimension_semantics = [#tpu.dimension_semantics<parallel>], iteration_bounds = array<i64: 1>, scalar_prefetch = 0 : i64, scratch_operands = 0 : i64, tpu.core_type = #tpu.core_type<tc>, window_params = [{transform_indices = @transform_0, window_bounds = array<i64: 8, 256>}, {pipeline_mode = #tpu.pipeline_mode<synchronous>, transform_indices = @transform_1, window_bounds = array<i64: 256, 256>}, {transform_indices = @transform_2, window_bounds = array<i64: 8, 256>}]} {
    %c0 = arith.constant 0 : index
    %c0_0 = arith.constant 0 : index
    %0 = vector.load %arg1[%c0, %c0_0] : memref<8x256xf32, #tpu.memory_space<vmem>>, vector<8x256xf32>
    %c0_1 = arith.constant 0 : index
    %c0_2 = arith.constant 0 : index
    %1 = vector.load %arg2[%c0_1, %c0_2] : memref<256x256xf32, #tpu.memory_space<vmem>>, vector<256x256xf32>
    %cst = arith.constant dense<0.000000e+00> : vector<8x256xf32>
    %2 = tpu.matmul %0, %1, %cst {dimension_numbers = #tpu.dot_dimension_numbers<[1], [0], [0], [1], [0, 0, 1, 1], [], []>} : vector<8x256xf32>, vector<256x256xf32>, vector<8x256xf32> -> vector<8x256xf32>
    %c0_3 = arith.constant 0 : index
    %c0_4 = arith.constant 0 : index
    %3 = vector.load %arg3[%c0_3, %c0_4] : memref<8x256xf32, #tpu.memory_space<vmem>>, vector<8x256xf32>
    tpu.vector_store %arg3[%c0_3, %c0_4], %2 {strides = array<i32>} : memref<8x256xf32, #tpu.memory_space<vmem>>, vector<8x256xf32>,
    return
  }
  func.func @transform_0(%arg0: i32) -> (i32, i32) {
    %c0_i32 = arith.constant 0 : i32
    %c0_i32_0 = arith.constant 0 : i32
    return %arg0, %c0_i32 : i32, i32
  }
  func.func @transform_1(%arg0: i32) -> (i32, i32) {
    %c0_i32 = arith.constant 0 : i32
    %c0_i32_0 = arith.constant 0 : i32
    %c0_i32_1 = arith.constant 0 : i32
    return %c0_i32, %c0_i32_0 : i32, i32
  }
  func.func @transform_2(%arg0: i32) -> (i32, i32) {
    %c0_i32 = arith.constant 0 : i32
    %c0_i32_0 = arith.constant 0 : i32
    return %arg0, %c0_i32 : i32, i32
  }
}

</mosaic_0001>

<llo_original>
// kernel: tpu_custom_call.1
$region0: #{tpu_custom_call.1}
  #allocation0 [shape = 'u32[]', space=smem, size = 0x4, offset = 0x4, fixed_abs, tag = 'smem constant byte address 0x4 - core index']
  #allocation1 [shape = 'u32[144,128]{1,0:T(1,128)}', space=vmem, size = 0x12000, scoped, tag = 'internal scratch']
  %s0 = inlined_call_operand.hbm [shape: f32[8,256], index: 0, kind: input, shape index: {}]
  %s1 = inlined_call_operand.hbm [shape: f32[256,256], index: 1, kind: input, shape index: {}]
  %s2 = inlined_call_operand.hbm [shape: f32[8,256], index: 2, kind: output, shape index: {}]
  %s3 = sld [smem:[#allocation0]]
  $region26: #{tpu_custom_call.1} parent=0
    _
  %s5 = ssub.s32 1, %s3
  %s6 = scalar_select 0, %s5, %s3
  $region1: #{tpu_custom_call.1} parent=0
    #allocation2 [shape = 'u8[8192]{0}', space=vmem, size = 0x2000, scoped, tag = 'input window, operand 0, single buffered']
    #allocation3 [shape = 's32[1]{0}', space=sflag, size = 0x4, scoped, tag = 'scoped memory for tpu_custom_call.1']
    #allocation4 [shape = 's32[1]{0}', space=sflag, size = 0x4, scoped, tag = 'scoped memory for tpu_custom_call.1']
    #allocation5 [shape = 'u8[262144]{0}', space=vmem, size = 0x40000, scoped, tag = 'input window, operand 1, single buffered']
    #allocation6 [shape = 's32[1]{0}', space=sflag, size = 0x4, scoped, tag = 'scoped memory for tpu_custom_call.1']
    #allocation7 [shape = 'u8[8192]{0}', space=vmem, size = 0x2000, scoped, tag = 'output window, operand 0, single buffered']
    %7 = vsyncpa [#allocation3], 0
    %8 = vsyncpa [#allocation6], 0
    %9 = vsyncpa [#allocation4], 0
    // Predicated region
    $region2: #{tpu_custom_call.1} parent=1 // pred_check
      _
    $region3: #{tpu_custom_call.1} parent=1 // pred_check_branch
      %11 = sbr.rel (0) target = $region5
    $region4: #{tpu_custom_call.1} parent=1 // pred_region
      %s13 = ssub.s32 256, 256
      %14 = vsyncadd [#allocation3], %s13
      %s16 = sshll.u32 [#allocation2], 4
      %s17 = int_to_ptr.vmem [resolvable:$true] %s16
      %19 = dma.hbm_to_vmem [thread:$0]  %s0, 256, %s17, [#allocation3]
    $region5: #{tpu_custom_call.1} parent=1 // pred_fallthru
      _
    // Predicated region
    $region6: #{tpu_custom_call.1} parent=1 // pred_check
      _
    $region7: #{tpu_custom_call.1} parent=1 // pred_check_branch
      %21 = sbr.rel (0) target = $region9
    $region8: #{tpu_custom_call.1} parent=1 // pred_region
      %s23 = ssub.s32 8192, 8192
      %24 = vsyncadd [#allocation6], %s23
      %s25 = sshll.u32 [#allocation5], 4
      %s26 = int_to_ptr.vmem [resolvable:$true] %s25
      %31 = dma.hbm_to_vmem [thread:$0]  %s1, 8192, %s26, [#allocation6], 256, 256, 16
    $region9: #{tpu_custom_call.1} parent=1 // pred_fallthru
      _
    // Predicated region
    $region10: #{tpu_custom_call.1} parent=1 // pred_check
      _
    $region11: #{tpu_custom_call.1} parent=1 // pred_check_branch
      %33 = sbr.rel (0) target = $region13
    $region12: #{tpu_custom_call.1} parent=1 // pred_region
      %34 = dma.done [#allocation3], 256
    $region13: #{tpu_custom_call.1} parent=1 // pred_fallthru
      _
    // Predicated region
    $region14: #{tpu_custom_call.1} parent=1 // pred_check
      _
    $region15: #{tpu_custom_call.1} parent=1 // pred_check_branch
      %36 = sbr.rel (0) target = $region17
    $region16: #{tpu_custom_call.1} parent=1 // pred_region
      %37 = dma.done [#allocation6], 8192
    $region17: #{tpu_custom_call.1} parent=1 // pred_fallthru
      _
    %v38 = vld [vmem:[#allocation2] sm:$0xff]
    %v39 = vld [vmem:[#allocation2 + $0x8] sm:$0xff]
    %v40 = vld [vmem:[#allocation5] sm:$0xff]
    %v41 = vld [vmem:[#allocation5 + $0x8] sm:$0xff]
    %v42 = vld [vmem:[#allocation5 + $0x10] sm:$0xff]
    %v43 = vld [vmem:[#allocation5 + $0x18] sm:$0xff]
    %v44 = vld [vmem:[#allocation5 + $0x20] sm:$0xff]
    %v45 = vld [vmem:[#allocation5 + $0x28] sm:$0xff]
    %v46 = vld [vmem:[#allocation5 + $0x30] sm:$0xff]
    %v47 = vld [vmem:[#allocation5 + $0x38] sm:$0xff]
    %v48 = vld [vmem:[#allocation5 + $0x40] sm:$0xff]
    %v49 = vld [vmem:[#allocation5 + $0x48] sm:$0xff]
    %v50 = vld [vmem:[#allocation5 + $0x50] sm:$0xff]
    %v51 = vld [vmem:[#allocation5 + $0x58] sm:$0xff]
    %v52 = vld [vmem:[#allocation5 + $0x60] sm:$0xff]
    %v53 = vld [vmem:[#allocation5 + $0x68] sm:$0xff]
    %v54 = vld [vmem:[#allocation5 + $0x70] sm:$0xff]
    %v55 = vld [vmem:[#allocation5 + $0x78] sm:$0xff]
    %v56 = vld [vmem:[#allocation5 + $0x80] sm:$0xff]
    %v57 = vld [vmem:[#allocation5 + $0x88] sm:$0xff]
    %v58 = vld [vmem:[#allocation5 + $0x90] sm:$0xff]
    %v59 = vld [vmem:[#allocation5 + $0x98] sm:$0xff]
    %v60 = vld [vmem:[#allocation5 + $0xa0] sm:$0xff]
    %v61 = vld [vmem:[#allocation5 + $0xa8] sm:$0xff]
    %v62 = vld [vmem:[#allocation5 + $0xb0] sm:$0xff]
    %v63 = vld [vmem:[#allocation5 + $0xb8] sm:$0xff]
    %v64 = vld [vmem:[#allocation5 + $0xc0] sm:$0xff]
    %v65 = vld [vmem:[#allocation5 + $0xc8] sm:$0xff]
    %v66 = vld [vmem:[#allocation5 + $0xd0] sm:$0xff]
    %v67 = vld [vmem:[#allocation5 + $0xd8] sm:$0xff]
    %v68 = vld [vmem:[#allocation5 + $0xe0] sm:$0xff]
    %v69 = vld [vmem:[#allocation5 + $0xe8] sm:$0xff]
    %v70 = vld [vmem:[#allocation5 + $0xf0] sm:$0xff]
    %v71 = vld [vmem:[#allocation5 + $0xf8] sm:$0xff]
    %v72 = vld [vmem:[#allocation5 + $0x100] sm:$0xff]
    %v73 = vld [vmem:[#allocation5 + $0x108] sm:$0xff]
    %v74 = vld [vmem:[#allocation5 + $0x110] sm:$0xff]
    %v75 = vld [vmem:[#allocation5 + $0x118] sm:$0xff]
    %v76 = vld [vmem:[#allocation5 + $0x120] sm:$0xff]
    %v77 = vld [vmem:[#allocation5 + $0x128] sm:$0xff]
    %v78 = vld [vmem:[#allocation5 + $0x130] sm:$0xff]
    %v79 = vld [vmem:[#allocation5 + $0x138] sm:$0xff]
    %v80 = vld [vmem:[#allocation5 + $0x140] sm:$0xff]
    %v81 = vld [vmem:[#allocation5 + $0x148] sm:$0xff]
    %v82 = vld [vmem:[#allocation5 + $0x150] sm:$0xff]
    %v83 = vld [vmem:[#allocation5 + $0x158] sm:$0xff]
    %v84 = vld [vmem:[#allocation5 + $0x160] sm:$0xff]
    %v85 = vld [vmem:[#allocation5 + $0x168] sm:$0xff]
    %v86 = vld [vmem:[#allocation5 + $0x170] sm:$0xff]
    %v87 = vld [vmem:[#allocation5 + $0x178] sm:$0xff]
    %v88 = vld [vmem:[#allocation5 + $0x180] sm:$0xff]
    %v89 = vld [vmem:[#allocation5 + $0x188] sm:$0xff]
    %v90 = vld [vmem:[#allocation5 + $0x190] sm:$0xff]
    %v91 = vld [vmem:[#allocation5 + $0x198] sm:$0xff]
    %v92 = vld [vmem:[#allocation5 + $0x1a0] sm:$0xff]
    %v93 = vld [vmem:[#allocation5 + $0x1a8] sm:$0xff]
    %v94 = vld [vmem:[#allocation5 + $0x1b0] sm:$0xff]
    %v95 = vld [vmem:[#allocation5 + $0x1b8] sm:$0xff]
    %v96 = vld [vmem:[#allocation5 + $0x1c0] sm:$0xff]
    %v97 = vld [vmem:[#allocation5 + $0x1c8] sm:$0xff]
    %v98 = vld [vmem:[#allocation5 + $0x1d0] sm:$0xff]
    %v99 = vld [vmem:[#allocation5 + $0x1d8] sm:$0xff]
    %v100 = vld [vmem:[#allocation5 + $0x1e0] sm:$0xff]
    %v101 = vld [vmem:[#allocation5 + $0x1e8] sm:$0xff]
    %v102 = vld [vmem:[#allocation5 + $0x1f0] sm:$0xff]
    %v103 = vld [vmem:[#allocation5 + $0x1f8] sm:$0xff]
    %104 = vmatprep.subr.mxu0 %v41
    %105 = vmatpush1.msra.mxu0 %v40
    %106 = vmatprep.subr.mxu0 %v43
    %107 = vmatpush1.msra.mxu0 %v42
    %108 = vmatprep.subr.mxu0 %v45
    %109 = vmatpush1.msra.mxu0 %v44
    %110 = vmatprep.subr.mxu0 %v47
    %111 = vmatpush1.msra.mxu0 %v46
    %112 = vmatprep.subr.mxu0 %v49
    %113 = vmatpush1.msra.mxu0 %v48
    %114 = vmatprep.subr.mxu0 %v51
    %115 = vmatpush1.msra.mxu0 %v50
    %116 = vmatprep.subr.mxu0 %v53
    %117 = vmatpush1.msra.mxu0 %v52
    %118 = vmatprep.subr.mxu0 %v55
    %119 = vmatpush1.msra.mxu0 %v54
    %120 = vmatprep.subr.mxu0 %v57
    %121 = vmatpush1.msra.mxu0 %v56
    %122 = vmatprep.subr.mxu0 %v59
    %123 = vmatpush1.msra.mxu0 %v58
    %124 = vmatprep.subr.mxu0 %v61
    %125 = vmatpush1.msra.mxu0 %v60
    %126 = vmatprep.subr.mxu0 %v63
    %127 = vmatpush1.msra.mxu0 %v62
    %128 = vmatprep.subr.mxu0 %v65
    %129 = vmatpush1.msra.mxu0 %v64
    %130 = vmatprep.subr.mxu0 %v67
    %131 = vmatpush1.msra.mxu0 %v66
    %132 = vmatprep.subr.mxu0 %v69
    %133 = vmatpush1.msra.mxu0 %v68
    %134 = vmatprep.subr.mxu0 %v71
    %135 = vmatpush1.msra.mxu0 %v70
    %136 = vmatprep.subr.mxu0 %v73
    %137 = vmatpush1.msra.mxu0 %v72
    %138 = vmatprep.subr.mxu0 %v75
    %139 = vmatpush1.msra.mxu0 %v74
    %140 = vmatprep.subr.mxu0 %v77
    %141 = vmatpush1.msra.mxu0 %v76
    %142 = vmatprep.subr.mxu0 %v79
    %143 = vmatpush1.msra.mxu0 %v78
    %144 = vmatprep.subr.mxu0 %v81
    %145 = vmatpush1.msra.mxu0 %v80
    %146 = vmatprep.subr.mxu0 %v83
    %147 = vmatpush1.msra.mxu0 %v82
    %148 = vmatprep.subr.mxu0 %v85
    %149 = vmatpush1.msra.mxu0 %v84
    %150 = vmatprep.subr.mxu0 %v87
    %151 = vmatpush1.msra.mxu0 %v86
    %152 = vmatprep.subr.mxu0 %v89
    %153 = vmatpush1.msra.mxu0 %v88
    %154 = vmatprep.subr.mxu0 %v91
    %155 = vmatpush1.msra.mxu0 %v90
    %156 = vmatprep.subr.mxu0 %v93
    %157 = vmatpush1.msra.mxu0 %v92
    %158 = vmatprep.subr.mxu0 %v95
    %159 = vmatpush1.msra.mxu0 %v94
    %160 = vmatprep.subr.mxu0 %v97
    %161 = vmatpush1.msra.mxu0 %v96
    %162 = vmatprep.subr.mxu0 %v99
    %163 = vmatpush1.msra.mxu0 %v98
    %164 = vmatprep.subr.mxu0 %v101
    %165 = vmatpush1.msra.mxu0 %v100
    %166 = vmatprep.subr.mxu0 %v103
    %167 = vmatpush1.msra.mxu0 %v102
    %168 = vmatprep.mubr.f32.mxu0 %v39
    %169 = vmatmul.mubr.f32.gmra.mrb[0].mxu0 %v38
    %v170 = vpop.f32.mrb[0].mxu0
    %v171 = vadd.f32 0.0, %v170
    %v172 = vpop.f32.mrb[0].mxu0
    %v173 = vadd.f32 0.0, %v172
    %174 = vdwg.mxu0
    %175 = vst [vmem:[#allocation7] sm:$0xff] %v171
    %176 = vst [vmem:[#allocation7 + $0x8] sm:$0xff] %v173
    // Predicated region
    $region18: #{tpu_custom_call.1} parent=1 // pred_check
      _
    $region19: #{tpu_custom_call.1} parent=1 // pred_check_branch
      %178 = sbr.rel (0) target = $region21
    $region20: #{tpu_custom_call.1} parent=1 // pred_region
      %s180 = ssub.s32 256, 256
      %181 = vsyncadd [#allocation4], %s180
      %s183 = sshll.u32 [#allocation7], 4
      %s184 = int_to_ptr.vmem [resolvable:$true] %s183
      %186 = dma.vmem_to_hbm [thread:$0]  %s184, 256, %s2, [#allocation4]
    $region21: #{tpu_custom_call.1} parent=1 // pred_fallthru
      _
    // Predicated region
    $region22: #{tpu_custom_call.1} parent=1 // pred_check
      _
    $region23: #{tpu_custom_call.1} parent=1 // pred_check_branch
      %188 = sbr.rel (0) target = $region25
    $region24: #{tpu_custom_call.1} parent=1 // pred_region
      %189 = dma.done [#allocation4], 256
    $region25: #{tpu_custom_call.1} parent=1 // pred_fallthru
      _
    %190 = vsyncpa [#allocation3], 1
    %191 = vsyncpa [#allocation6], 1
    %192 = vsyncpa [#allocation4], 1

</llo_original>
